<compile_context>
chip_gen: v6e
topology: v6e:2x2x1
jax: 0.10.0
libtpu: 0.0.40
codegen_flags: <defaults>
</compile_context>

<pallas_src>
import jax
import jax.numpy as jnp
from jax.experimental import pallas as pl
from jax.experimental.pallas import tpu as pltpu


def _sigmoid_range_kernel(params_ref, x_ref, o_ref):
    # params_ref: (2,) f32 in SMEM -> [low, high]
    low = params_ref[0]
    high = params_ref[1]

    x = x_ref[...]
    # bf16 compute stays in bf16 (v6e/v7x have bf16 VPU/EUP paths); everything else in f32.
    cdt = jnp.bfloat16 if x.dtype == jnp.bfloat16 else jnp.float32
    xf = x.astype(cdt)

    half = ((high - low) * 0.5).astype(cdt)   # 0.5*(high-low)
    mid = ((high + low) * 0.5).astype(cdt)    # 0.5*(high+low)

    # sigmoid(x)*(high-low)+low  ==  half*tanh(x/2) + mid   (1 transcendental/elem)
    y = jnp.tanh(xf * 0.5) * half + mid
    o_ref[...] = y.astype(o_ref.dtype)


def sigmoid_range(x, low, high, *, block_bytes=1 << 20, min_pallas_elements=1 << 16):
    """Pallas implementation of fastai sigmoid_range: sigmoid(x)*(high-low)+low."""
    orig_shape = x.shape
    dtype = x.dtype
    n = x.size

    # Small inputs: XLA fuses this elementwise op fine; pallas launch cost dominates.
    if n < min_pallas_elements:
        return (jax.nn.sigmoid(x) * (high - low) + low).astype(dtype)

    LANES = 128
    itemsize = jnp.dtype(dtype).itemsize

    # Flatten to a lane-dense (rows, 128) slab; pad only if the lane dim requires it.
    rows = -(-n // LANES)
    pad = rows * LANES - n
    xf = x.reshape(-1)
    if pad:
        xf = jnp.pad(xf, (0, pad))
    x2 = xf.reshape(rows, LANES)

    # Block rows from a byte budget (~1 MiB per block => ~4 MiB with in+out double
    # buffered; safe under v5e's 16 MiB scoped-VMEM default, and v7x's 32 MiB).
    tr = max(8, (block_bytes // (LANES * itemsize)) // 8 * 8)
    # Keep at least ~8 grid steps so v7x's two TensorCores both get work.
    min_steps = 8
    tr = min(tr, max(8, (rows // min_steps) // 8 * 8))
    # Never bigger than the (rounded-up) row count.
    tr = min(tr, -(-rows // 8) * 8)

    grid = (pl.cdiv(rows, tr),)  # partial edge block handled by Pallas (masked writes)

    params = jnp.asarray([low, high], dtype=jnp.float32)

    out2 = pl.pallas_call(
        _sigmoid_range_kernel,
        out_shape=jax.ShapeDtypeStruct((rows, LANES), dtype),
        grid_spec=pltpu.PrefetchScalarGridSpec(
            num_scalar_prefetch=0,
            grid=grid,
            in_specs=[
                pl.BlockSpec(memory_space=pltpu.MemorySpace.SMEM),  # (low, high) scalars
                pl.BlockSpec((tr, LANES), lambda i: (i, 0)),
            ],
            out_specs=pl.BlockSpec((tr, LANES), lambda i: (i, 0)),
        ),
        compiler_params=pltpu.CompilerParams(
            dimension_semantics=("parallel",),
        ),
        cost_estimate=pl.CostEstimate(
            flops=2 * rows * LANES,
            transcendentals=rows * LANES,
            bytes_accessed=2 * rows * LANES * itemsize,
        ),
    )(params, x2)

    if pad:
        return out2.reshape(-1)[:n].reshape(orig_shape)
    return out2.reshape(orig_shape)


class SigmoidRange:
    """JAX/Pallas equivalent of the PyTorch SigmoidRange module (no parameters)."""

    def __init__(self, low, high):
        self.low = low
        self.high = high

    def __call__(self, x):
        return sigmoid_range(x, self.low, self.high)


if __name__ == "__main__":
    key = jax.random.PRNGKey(0)
    low, high = 0.0, 5.0
    mod = SigmoidRange(low, high)

    # Module-sized NCHW input: batch=2, channels=4, spatial=16x16.
    # Force the Pallas path (disable the small-input fallback) so the kernel runs.
    x = jax.random.normal(key, (2, 4, 16, 16), dtype=jnp.float32)
    y = sigmoid_range(x, low, high, min_pallas_elements=0)
    jax.block_until_ready(y)
    y_ref = jax.nn.sigmoid(x) * (high - low) + low
    assert y.shape == x.shape and y.dtype == x.dtype
    assert jnp.max(jnp.abs(y - y_ref)) < 1e-5

    # Larger input exercising the real (byte-budgeted) tiling via the module call.
    x_big = jax.random.normal(jax.random.PRNGKey(1), (8, 64, 32, 32), dtype=jnp.float32)
    y_big = mod(x_big)
    jax.block_until_ready(y_big)
    y_big_ref = jax.nn.sigmoid(x_big) * (high - low) + low
    assert y_big.shape == x_big.shape and y_big.dtype == x_big.dtype
    assert jnp.max(jnp.abs(y_big - y_big_ref)) < 1e-5

    print("KERNEL_OK")
</pallas_src>

<mosaic_0001>
module attributes {stable_mosaic.version = 11 : i64} {
  func.func @_sigmoid_range_kernel(%arg0: i32, %arg1: memref<2xf32, #tpu.memory_space<smem>>, %arg2: memref<8x128xf32, #tpu.memory_space<vmem>>, %arg3: memref<8x128xf32, #tpu.memory_space<vmem>>) attributes {dimension_semantics = [#tpu.dimension_semantics<parallel>], iteration_bounds = array<i64: 2>, scalar_prefetch = 0 : i64, scratch_operands = 0 : i64, tpu.core_type = #tpu.core_type<tc>, window_params = [{transform_indices = @transform_0, window_bounds = array<i64: 2>}, {transform_indices = @transform_1, window_bounds = array<i64: 8, 128>}, {transform_indices = @transform_2, window_bounds = array<i64: 8, 128>}]} {
    %c0 = arith.constant 0 : index
    %0 = memref.load %arg1[%c0] : memref<2xf32, #tpu.memory_space<smem>>
    %c1 = arith.constant 1 : index
    %1 = memref.load %arg1[%c1] : memref<2xf32, #tpu.memory_space<smem>>
    %c0_0 = arith.constant 0 : index
    %c0_1 = arith.constant 0 : index
    %2 = vector.load %arg2[%c0_0, %c0_1] : memref<8x128xf32, #tpu.memory_space<vmem>>, vector<8x128xf32>
    %3 = arith.subf %1, %0 : f32
    %cst = arith.constant 5.000000e-01 : f32
    %4 = arith.mulf %3, %cst : f32
    %5 = arith.addf %1, %0 : f32
    %cst_2 = arith.constant 5.000000e-01 : f32
    %6 = arith.mulf %5, %cst_2 : f32
    %cst_3 = arith.constant 5.000000e-01 : f32
    %7 = vector.broadcast %cst_3 : f32 to vector<8x128xf32>
    %8 = arith.mulf %2, %7 : vector<8x128xf32>
    %9 = math.tanh %8 : vector<8x128xf32>
    %10 = vector.broadcast %4 : f32 to vector<8x128xf32>
    %11 = arith.mulf %9, %10 : vector<8x128xf32>
    %12 = vector.broadcast %6 : f32 to vector<8x128xf32>
    %13 = arith.addf %11, %12 : vector<8x128xf32>
    %c0_4 = arith.constant 0 : index
    %c0_5 = arith.constant 0 : index
    %14 = vector.load %arg3[%c0_4, %c0_5] : memref<8x128xf32, #tpu.memory_space<vmem>>, vector<8x128xf32>
    tpu.vector_store %arg3[%c0_4, %c0_5], %13 {strides = array<i32>} : memref<8x128xf32, #tpu.memory_space<vmem>>, vector<8x128xf32>,
    return
  }
  func.func @transform_0(%arg0: i32) -> i32 {
    %c0_i32 = arith.constant 0 : i32
    %c0_i32_0 = arith.constant 0 : i32
    return %c0_i32 : i32
  }
  func.func @transform_1(%arg0: i32) -> (i32, i32) {
    %c0_i32 = arith.constant 0 : i32
    %c0_i32_0 = arith.constant 0 : i32
    return %arg0, %c0_i32 : i32, i32
  }
  func.func @transform_2(%arg0: i32) -> (i32, i32) {
    %c0_i32 = arith.constant 0 : i32
    %c0_i32_0 = arith.constant 0 : i32
    return %arg0, %c0_i32 : i32, i32
  }
}

</mosaic_0001>

<llo_original>
// kernel: tpu_custom_call.1
$region0: #{tpu_custom_call.1}
  #allocation0 [shape = 'u32[]', space=smem, size = 0x4, offset = 0x4, fixed_abs, tag = 'smem constant byte address 0x4 - core index']
  #allocation1 [shape = 'u32[144,128]{1,0:T(1,128)}', space=vmem, size = 0x12000, scoped, tag = 'internal scratch']
  %s0 = inlined_call_operand.hbm [shape: f32[2], index: 0, kind: input, shape index: {}]
  %s1 = inlined_call_operand.hbm [shape: f32[16,128], index: 1, kind: input, shape index: {}]
  %s2 = inlined_call_operand.hbm [shape: f32[16,128], index: 2, kind: output, shape index: {}]
  %s3 = sld [smem:[#allocation0]]
  $region49: #{tpu_custom_call.1} parent=0
    _
  %s5 = ssub.s32 1, %s3
  %s6 = scalar_select 0, %s5, %s3
  $region1: #{tpu_custom_call.1} parent=0
    #allocation2 [shape = 'u8[512]{0}', space=smem, size = 0x200, scoped, tag = 'input window, operand 0, single buffered']
    #allocation3 [shape = 's32[2]{0}', space=sflag, size = 0x8, scoped, tag = 'scoped memory for tpu_custom_call.1']
    #allocation4 [shape = 's32[2]{0}', space=sflag, size = 0x8, scoped, tag = 'scoped memory for tpu_custom_call.1']
    #allocation5 [shape = 's32[2]{0}', space=sflag, size = 0x8, scoped, tag = 'scoped memory for tpu_custom_call.1']
    #allocation6 [shape = 'u8[8192]{0}', space=vmem, size = 0x2000, scoped, tag = 'input window, operand 1']
    #allocation7 [shape = 'u8[8192]{0}', space=vmem, size = 0x2000, scoped, tag = 'output window, operand 0']
    %7 = vsyncpa [#allocation5], 0
    %8 = vsyncpa [#allocation3], 0
    %s9 = scalar_lea.sflag [#allocation3], 1
    %10 = vsyncpa %s9, 0
    %11 = vsyncpa [#allocation4], 0
    %s12 = scalar_lea.sflag [#allocation4], 1
    %13 = vsyncpa %s12, 0
    loop: start=0, step=1, limit=4
    $region2: #{tpu_custom_call.1} parent=1 // loop_pre_header
      _
    $region3: #{tpu_custom_call.1} parent=1 // loop_header
      %s15 = sphi 0, %s19
      %p16 = scmp.ge.s32.totalorder %s15, 4
      %s23 = sphi 0, %s23
      %s25 = sphi 0, %s23
      %s26 = sphi 0, %s25
      %s40 = sphi 0, %s26
      %s46 = sphi 0, %s48
      %s49 = sphi 0, %s46
      %s50 = sphi 0, %s49
      %s66 = sphi 0, %s50
      %s72 = sphi 0, %s74
      %s75 = sphi 0, %s72
      %s76 = sphi 0, %s75
      %s92 = sphi 0, %s76
    $region4: #{tpu_custom_call.1} parent=1 // loop_header_branch
      %18 = sbr.rel (%p16) target = $region8
    $region5: #{tpu_custom_call.1} parent=1 // loop_body
      %s20 = ssub.s32 %s15, 1
      %s21 = ssub.s32 %s15, 2
      %s22 = sadd.s32 %s15, 1
      %s24 = sadd.s32 %s23, 1
      %p27 = scmp.eq.s32.totalorder %s15, 1
      %p28 = scmp.ne.s32.totalorder %s23, %s25
      %p29 = scmp.eq.s32.totalorder %s15, 0
      %p30 = por %p28, %p29
      %p31 = scmp.ne.s32.totalorder %s23, %s25
      %p32 = scmp.eq.s32.totalorder %s20, 1
      %p33 = por %p31, %p32
      %p34 = scmp.ne.s32.totalorder %s25, %s26
      %p35 = scmp.eq.s32.totalorder %s20, 0
      %p36 = por %p34, %p35
      %p37 = scmp.ne.s32.totalorder %s25, %s26
      %p38 = scmp.eq.s32.totalorder %s21, 1
      %p39 = por %p37, %p38
      %p41 = scmp.ne.s32.totalorder %s26, %s40
      %p42 = scmp.eq.s32.totalorder %s21, 0
      %p43 = por %p41, %p42
      %s44 = ssub.s32 %s15, %s22
      %p45 = scmp.eq.s32.totalorder %s44, 0
      %s47 = sadd.s32 %s46, 1
      %s48 = scalar_select %p45, %s46, %s47
      %p51 = pneg %p45
      %p52 = scmp.eq.s32.totalorder %s15, 1
      %p53 = por %p51, %p52
      %p54 = scmp.ne.s32.totalorder %s46, %s49
      %p55 = scmp.eq.s32.totalorder %s15, 0
      %p56 = por %p54, %p55
      %p57 = scmp.ne.s32.totalorder %s46, %s49
      %p58 = scmp.eq.s32.totalorder %s20, 1
      %p59 = por %p57, %p58
      %p60 = scmp.ne.s32.totalorder %s49, %s50
      %p61 = scmp.eq.s32.totalorder %s20, 0
      %p62 = por %p60, %p61
      %p63 = scmp.ne.s32.totalorder %s49, %s50
      %p64 = scmp.eq.s32.totalorder %s21, 1
      %p65 = por %p63, %p64
      %p67 = scmp.ne.s32.totalorder %s50, %s66
      %p68 = scmp.eq.s32.totalorder %s21, 0
      %p69 = por %p67, %p68
      %s70 = ssub.s32 %s15, %s22
      %p71 = scmp.eq.s32.totalorder %s70, 0
      %s73 = sadd.s32 %s72, 1
      %s74 = scalar_select %p71, %s72, %s73
      %p77 = pneg %p71
      %p78 = scmp.eq.s32.totalorder %s15, 1
      %p79 = por %p77, %p78
      %p80 = scmp.ne.s32.totalorder %s72, %s75
      %p81 = scmp.eq.s32.totalorder %s15, 0
      %p82 = por %p80, %p81
      %p83 = scmp.ne.s32.totalorder %s72, %s75
      %p84 = scmp.eq.s32.totalorder %s20, 1
      %p85 = por %p83, %p84
      %p86 = scmp.ne.s32.totalorder %s75, %s76
      %p87 = scmp.eq.s32.totalorder %s20, 0
      %p88 = por %p86, %p87
      %p89 = scmp.ne.s32.totalorder %s75, %s76
      %p90 = scmp.eq.s32.totalorder %s21, 1
      %p91 = por %p89, %p90
      %p93 = scmp.ne.s32.totalorder %s76, %s92
      %p94 = scmp.eq.s32.totalorder %s21, 0
      %p95 = por %p93, %p94
      %p96 = scmp.le.s32.totalorder 1, %s15
      %p97 = scmp.lt.s32.totalorder %s15, 3
      %p98 = pnand %p96, %p97
      %p99 = pneg %p98
      // Predicated region
      $region9: #{tpu_custom_call.1} parent=5 // pred_check
        _
      $region10: #{tpu_custom_call.1} parent=5 // pred_check_branch
        %101 = sbr.rel (%p98) target = $region12
      $region11: #{tpu_custom_call.1} parent=5 // pred_region
        %s102 = ssub.s32 %s15, 1
        // Predicated region
        $region13: #{tpu_custom_call.1} parent=11 // pred_check
          %p103 = pneg %p36
        $region14: #{tpu_custom_call.1} parent=11 // pred_check_branch
          %105 = sbr.rel (%p103) target = $region16
        $region15: #{tpu_custom_call.1} parent=11 // pred_region
          %s107 = ssub.s32 16, 16
          %108 = vsyncadd [#allocation5], %s107
          %111 = dma.hbm_to_smem %s0, 16, [#allocation2], [#allocation5]
        $region16: #{tpu_custom_call.1} parent=11 // pred_fallthru
          _
      $region12: #{tpu_custom_call.1} parent=5 // pred_fallthru
        _
      %p112 = scmp.lt.s32.totalorder %s15, 2
      // Predicated region
      $region17: #{tpu_custom_call.1} parent=5 // pred_check
        %p113 = pneg %p112
      $region18: #{tpu_custom_call.1} parent=5 // pred_check_branch
        %115 = sbr.rel (%p113) target = $region20
      $region19: #{tpu_custom_call.1} parent=5 // pred_region
        // Predicated region
        $region21: #{tpu_custom_call.1} parent=19 // pred_check
          %p116 = pneg %p56
        $region22: #{tpu_custom_call.1} parent=19 // pred_check_branch
          %118 = sbr.rel (%p116) target = $region24
        $region23: #{tpu_custom_call.1} parent=19 // pred_region
          %s119 = sand.u32 %s46, 1
          %s120 = scalar_lea.sflag [#allocation3], %s119
          %s121 = sand.u32 %s46, 1
          %s122 = smul.addr %s121, 8
          %s123 = scalar_lea.vmem [#allocation6], %s122
          %s125 = ssub.s32 128, 128
          %126 = vsyncadd %s120, %s125
          %s127 = smul.addr %s15, 128
          %s128 = scalar_lea.hbm %s1, %s127
          %s130 = sshll.u32 %s123, 4
          %s131 = int_to_ptr.vmem [resolvable:$true] %s130
          %133 = dma.hbm_to_vmem [thread:$0]  %s128, 128, %s131, %s120
        $region24: #{tpu_custom_call.1} parent=19 // pred_fallthru
          _
      $region20: #{tpu_custom_call.1} parent=5 // pred_fallthru
        _
      %p134 = scmp.le.s32.totalorder 1, %s15
      %p135 = scmp.lt.s32.totalorder %s15, 3
      %p136 = pnand %p134, %p135
      %p137 = pneg %p136
      // Predicated region
      $region25: #{tpu_custom_call.1} parent=5 // pred_check
        _
      $region26: #{tpu_custom_call.1} parent=5 // pred_check_branch
        %139 = sbr.rel (%p136) target = $region28
      $region27: #{tpu_custom_call.1} parent=5 // pred_region
        %s140 = ssub.s32 %s15, 1
        // Predicated region
        $region29: #{tpu_custom_call.1} parent=27 // pred_check
          %p141 = pneg %p36
        $region30: #{tpu_custom_call.1} parent=27 // pred_check_branch
          %143 = sbr.rel (%p141) target = $region32
        $region31: #{tpu_custom_call.1} parent=27 // pred_region
          %144 = dma.done [#allocation5], 16
        $region32: #{tpu_custom_call.1} parent=27 // pred_fallthru
          _
        %s145 = sand.u32 %s49, 1
        %s146 = scalar_lea.sflag [#allocation3], %s145
        %s147 = sand.u32 %s49, 1
        %s148 = smul.addr %s147, 8
        %s149 = scalar_lea.vmem [#allocation6], %s148
        // Predicated region
        $region33: #{tpu_custom_call.1} parent=27 // pred_check
          %p150 = pneg %p62
        $region34: #{tpu_custom_call.1} parent=27 // pred_check_branch
          %152 = sbr.rel (%p150) target = $region36
        $region35: #{tpu_custom_call.1} parent=27 // pred_region
          %153 = dma.done %s146, 128
        $region36: #{tpu_custom_call.1} parent=27 // pred_fallthru
          _
        %154 = sfence
        %p155 = pneg %p36
        %p156 = pneg %p33
        %s157 = sand.u32 %s49, 1
        %s158 = scalar_lea.sflag [#allocation3], %s157
        %s159 = sand.u32 %s49, 1
        %s160 = smul.addr %s159, 8
        %s161 = scalar_lea.vmem [#allocation6], %s160
        %p162 = pneg %p62
        %p163 = pneg %p59
        %p164 = pneg %p88
        %p165 = pneg %p85
        %s166 = sand.u32 %s75, 1
        %s167 = scalar_lea.sflag [#allocation4], %s166
        %s168 = sand.u32 %s75, 1
        %s169 = smul.addr %s168, 8
        %s170 = scalar_lea.vmem [#allocation7], %s169
        %s171 = sld [smem:[#allocation2]]
        %s172 = sld [smem:[#allocation2 + $0x1]]
        %v173 = vld [vmem:[%s149] sm:$0xff]
        %s174 = ssub.f32 %s172, %s171
        %s175 = smul.f32 %s174, 0.5
        %s176 = sadd.f32 %s172, %s171
        %s177 = smul.f32 %s176, 0.5
        %v178 = vmul.f32 %v173, 0.5
        %v179 = vtanh.pop %v178
        %v180 = vstv %s175
        %v181 = vmul.f32 %v179, %v180
        %v182 = vstv %s177
        %v183 = vadd.f32 %v181, %v182
        %184 = vst [vmem:[%s170] sm:$0xff] %v183
        %s185 = sand.u32 %s75, 1
        %s186 = scalar_lea.sflag [#allocation4], %s185
        %s187 = sand.u32 %s75, 1
        %s188 = smul.addr %s187, 8
        %s189 = scalar_lea.vmem [#allocation7], %s188
        // Predicated region
        $region37: #{tpu_custom_call.1} parent=27 // pred_check
          %p190 = pneg %p85
        $region38: #{tpu_custom_call.1} parent=27 // pred_check_branch
          %192 = sbr.rel (%p190) target = $region40
        $region39: #{tpu_custom_call.1} parent=27 // pred_region
          %s194 = ssub.s32 128, 128
          %195 = vsyncadd %s186, %s194
          %s196 = smul.addr %s20, 128
          %s197 = scalar_lea.hbm %s2, %s196
          %s199 = sshll.u32 %s189, 4
          %s200 = int_to_ptr.vmem [resolvable:$true] %s199
          %202 = dma.vmem_to_hbm [thread:$0]  %s200, 128, %s197, %s186
        $region40: #{tpu_custom_call.1} parent=27 // pred_fallthru
          _
      $region28: #{tpu_custom_call.1} parent=5 // pred_fallthru
        _
      %p203 = scmp.le.s32.totalorder 2, %s15
      // Predicated region
      $region41: #{tpu_custom_call.1} parent=5 // pred_check
        %p204 = pneg %p203
      $region42: #{tpu_custom_call.1} parent=5 // pred_check_branch
        %206 = sbr.rel (%p204) target = $region44
      $region43: #{tpu_custom_call.1} parent=5 // pred_region
        %s207 = ssub.s32 %s15, 2
        // Predicated region
        $region45: #{tpu_custom_call.1} parent=43 // pred_check
          %p208 = pneg %p91
        $region46: #{tpu_custom_call.1} parent=43 // pred_check_branch
          %210 = sbr.rel (%p208) target = $region48
        $region47: #{tpu_custom_call.1} parent=43 // pred_region
          %s211 = sand.u32 %s76, 1
          %s212 = scalar_lea.sflag [#allocation4], %s211
          %s213 = sand.u32 %s76, 1
          %s214 = smul.addr %s213, 8
          %s215 = scalar_lea.vmem [#allocation7], %s214
          %216 = dma.done %s212, 128
        $region48: #{tpu_custom_call.1} parent=43 // pred_fallthru
          _
      $region44: #{tpu_custom_call.1} parent=5 // pred_fallthru
        _
    $region6: #{tpu_custom_call.1} parent=1 // loop_footer
      %s19 = sadd.s32 1, %s15
    $region7: #{tpu_custom_call.1} parent=1 // loop_footer_branch
      %14 = sbr.rel target = $region3
    $region8: #{tpu_custom_call.1} parent=1 // loop_exit
      _
    %217 = vsyncpa [#allocation3], 1
    %s218 = scalar_lea.sflag [#allocation3], 1
    %219 = vsyncpa %s218, 1
    %220 = vsyncpa [#allocation4], 1
    %s221 = scalar_lea.sflag [#allocation4], 1
    %222 = vsyncpa %s221, 1
    %223 = vsyncpa [#allocation5], 1
    %s224 = scalar_lea.sflag [#allocation5], 1
    %225 = vsyncpa %s224, 1

</llo_original>
